<compile_context>
chip_gen: v6e
topology: v6e:2x2x1
jax: 0.10.0
libtpu: 0.0.40
codegen_flags: <defaults>
</compile_context>

<pallas_src>
from functools import partial

import jax
import jax.numpy as jnp
from jax import lax
from jax.experimental import pallas as pl
from jax.experimental.pallas import tpu as pltpu
import numpy as np


def _round_up(x, m):
  return ((x + m - 1) // m) * m


def rpn_kernel(x_ref, w3_ref, b3_ref, wh_ref, bh_ref, out_ref):
  """One batch group per grid step, channel-major (lane dim = bt*HW).

  x_ref:   (K_pad, bt*HW)    im2col patches, bf16, channel-major
  w3_ref:  (M, K_pad)        3x3 conv weights (flattened taps), bf16
  b3_ref:  (M, 1)            f32
  wh_ref:  (n_head_pad, M)   fused cls||bbox 1x1 head weights, bf16
  bh_ref:  (n_head_pad, 1)   f32
  out_ref: (bt, n_head_pad, HW)  f32; rows [0,A)=cls, [a_pad,a_pad+4A)=bbox
  """
  bt, _, hw = out_ref.shape

  # 3x3 conv as ONE im2col matmul over the folded batch*HW lane dim (MXU),
  # bias + ReLU on the VPU.  bf16 inputs, f32 accumulation.
  hidden = jnp.maximum(
      jnp.dot(w3_ref[...], x_ref[...], preferred_element_type=jnp.float32)
      + b3_ref[...], 0.0)

  # Fused 1x1 heads: one (n_head_pad, M) @ (M, bt*HW) matmul.
  out = jnp.dot(wh_ref[...], hidden.astype(wh_ref.dtype),
                preferred_element_type=jnp.float32) + bh_ref[...]

  # Per-batch writeback: aligned lane slices (hw is a multiple of 128), no
  # transposes, no masked stores (n_head_pad is sublane-aligned).
  for b in range(bt):  # bt is static and tiny -> unrolled
    out_ref[b] = out[:, b * hw:(b + 1) * hw].astype(out_ref.dtype)


def _num_tensorcores():
  """2 on v7x (2 TCs/chip), else 1.  Only affects grid splitting."""
  try:
    kind = jax.devices()[0].device_kind.lower()
  except Exception:
    return 1
  return 2 if ("v7" in kind or "7x" in kind) else 1


def _pick_batch_tile(batch, n_cores):
  """Smallest-count even split over cores; a single step on 1-TC parts."""
  if n_cores <= 1 or batch <= 1:
    return batch
  for bt in range(max(1, batch // n_cores), batch + 1):
    if batch % bt == 0:
      return bt
  return batch


def prepare_params(params):
  """One-time weight relayout (hoisted out of the per-call forward)."""
  w3, b3, wc, bc, wb, bb = (params["w3"], params["b3"], params["wc"],
                            params["bc"], params["wb"], params["bb"])
  M, C = w3.shape[0], w3.shape[1]
  A, A4 = wc.shape[0], wb.shape[0]
  K = 9 * C
  K_pad = _round_up(K, 16)            # bf16 sublane packing for the x operand
  a_pad = _round_up(A, 16)            # bbox rows start at an aligned offset
  n_head_pad = _round_up(a_pad + A4, 16)

  # OIHW (M, C, 3, 3) -> (M, 9C), column index = (ky*3+kx)*C + c, zero-padded.
  w3_t = jnp.transpose(w3, (0, 2, 3, 1)).reshape(M, K)
  w3_t = jnp.pad(w3_t, ((0, 0), (0, K_pad - K))).astype(jnp.bfloat16)
  b3_c = b3.reshape(M, 1).astype(jnp.float32)

  # Fused 1x1 heads: rows [0,A)=cls, [a_pad, a_pad+4A)=bbox, zeros elsewhere.
  wh = (jnp.zeros((n_head_pad, M), jnp.float32)
        .at[:A].set(wc).at[a_pad:a_pad + A4].set(wb)).astype(jnp.bfloat16)
  bh = (jnp.zeros((n_head_pad, 1), jnp.float32)
        .at[:A, 0].set(bc).at[a_pad:a_pad + A4, 0].set(bb))
  return {"w3_t": w3_t, "b3_c": b3_c, "wh": wh, "bh": bh}


@partial(jax.jit, static_argnames=("num_anchors",))
def rpn_forward(x_nchw, w3_t, b3_c, wh, bh, *, num_anchors):
  """Forward pass matching torch RPN.forward. x_nchw: [B, C, H, W] float32."""
  B, C, H, W = x_nchw.shape
  HW = H * W
  M = w3_t.shape[0]
  K = 9 * C
  K_pad = w3_t.shape[1]
  n_head_pad = wh.shape[0]
  A = num_anchors
  A4 = 4 * num_anchors
  a_pad = _round_up(A, 16)

  # ---- per-call glue: channel-major im2col with batch folded into lanes ----
  #   patches[t*C + c, b*HW + y*W + x] = x_pad[b, c, y + ky, x + kx]
  x_pad = jnp.pad(x_nchw, ((0, 0), (0, 0), (1, 1), (1, 1)))
  taps = [x_pad[:, :, ky:ky + H, kx:kx + W]
          for ky in range(3) for kx in range(3)]
  patches = jnp.stack(taps, axis=0).transpose(0, 2, 1, 3, 4).reshape(K, B * HW)
  patches = jnp.pad(patches, ((0, K_pad - K), (0, 0))).astype(jnp.bfloat16)

  # Grid: 1 step on v5e/v6e, split batch groups across the 2 TCs on v7x.
  bt = _pick_batch_tile(B, _num_tensorcores())
  if (bt * HW) % 128 != 0:
    bt = B  # fall back to a single full-extent lane block
  grid = (B // bt,)
  lane_tile = bt * HW

  grid_spec = pltpu.PrefetchScalarGridSpec(
      num_scalar_prefetch=0,
      grid=grid,
      in_specs=[
          pl.BlockSpec((K_pad, lane_tile), lambda i: (0, i)),
          pl.BlockSpec((M, K_pad), lambda i: (0, 0)),
          pl.BlockSpec((M, 1), lambda i: (0, 0)),
          pl.BlockSpec((n_head_pad, M), lambda i: (0, 0)),
          pl.BlockSpec((n_head_pad, 1), lambda i: (0, 0)),
      ],
      out_specs=pl.BlockSpec((bt, n_head_pad, HW), lambda i: (i, 0, 0)),
  )

  out_cm = pl.pallas_call(
      rpn_kernel,
      out_shape=jax.ShapeDtypeStruct((B, n_head_pad, HW), jnp.float32),
      grid_spec=grid_spec,
      compiler_params=pltpu.CompilerParams(
          dimension_semantics=("parallel",)),
  )(patches, w3_t, b3_c, wh, bh)

  # Channel-major output already matches NCHW up to a free slice + reshape.
  logits = out_cm[:, :A, :].reshape(B, A, H, W)
  bbox = out_cm[:, a_pad:a_pad + A4, :].reshape(B, A4, H, W)
  return logits, bbox


def rpn_reference(x_nchw, params):
  """Pure-JAX (XLA conv, f32) reference for correctness checking."""
  h = lax.conv_general_dilated(
      x_nchw, params["w3"], window_strides=(1, 1), padding="SAME",
      dimension_numbers=("NCHW", "OIHW", "NCHW"))
  h = jnp.maximum(h + params["b3"][None, :, None, None], 0.0)
  logits = lax.conv_general_dilated(
      h, params["wc"][:, :, None, None], (1, 1), "VALID",
      dimension_numbers=("NCHW", "OIHW", "NCHW"))
  logits = logits + params["bc"][None, :, None, None]
  bbox = lax.conv_general_dilated(
      h, params["wb"][:, :, None, None], (1, 1), "VALID",
      dimension_numbers=("NCHW", "OIHW", "NCHW"))
  bbox = bbox + params["bb"][None, :, None, None]
  return logits, bbox


def init_params(key, in_channels, mid_channels, num_anchors):
  """Deterministic synthetic init; layouts match nn.Conv2d weights (OIHW)."""
  k = jax.random.split(key, 6)
  s3 = 1.0 / jnp.sqrt(in_channels * 9.0)
  s1 = 1.0 / jnp.sqrt(float(mid_channels))
  return {
      "w3": jax.random.uniform(k[0], (mid_channels, in_channels, 3, 3),
                               jnp.float32, -s3, s3),
      "b3": jax.random.uniform(k[1], (mid_channels,), jnp.float32, -s3, s3),
      "wc": jax.random.uniform(k[2], (num_anchors, mid_channels),
                               jnp.float32, -s1, s1),
      "bc": jax.random.uniform(k[3], (num_anchors,), jnp.float32, -s1, s1),
      "wb": jax.random.uniform(k[4], (num_anchors * 4, mid_channels),
                               jnp.float32, -s1, s1),
      "bb": jax.random.uniform(k[5], (num_anchors * 4,), jnp.float32,
                               -s1, s1),
  }


if __name__ == "__main__":
  # Small shapes consistent with the module: B=2, C_in=4, 16x16 feature map,
  # mid_channels=32, num_anchors=9.
  B, C_IN, H, W = 2, 4, 16, 16
  MID, NA = 32, 9

  key = jax.random.PRNGKey(0)
  k_x, k_p = jax.random.split(key)
  x = jax.random.normal(k_x, (B, C_IN, H, W), jnp.float32)
  params = init_params(k_p, C_IN, MID, NA)

  # One-time weight relayout + bf16 cast (hoisted out of the forward).
  prep = prepare_params(params)

  logits, bbox_regs = rpn_forward(x, prep["w3_t"], prep["b3_c"],
                                  prep["wh"], prep["bh"], num_anchors=NA)
  logits, bbox_regs = jax.block_until_ready((logits, bbox_regs))

  assert logits.shape == (B, NA, H, W)
  assert bbox_regs.shape == (B, NA * 4, H, W)

  ref_logits, ref_bbox = rpn_reference(x, params)
  # bf16 MXU operands (f32 accumulation) -> looser tolerance vs. f32 reference.
  np.testing.assert_allclose(np.asarray(logits), np.asarray(ref_logits),
                             rtol=2e-2, atol=2e-2)
  np.testing.assert_allclose(np.asarray(bbox_regs), np.asarray(ref_bbox),
                             rtol=2e-2, atol=2e-2)

  print("KERNEL_OK")
</pallas_src>

<mosaic_0001>
module attributes {stable_mosaic.version = 11 : i64} {
  func.func @rpn_kernel(%arg0: i32, %arg1: memref<48x512xbf16, #tpu.memory_space<vmem>>, %arg2: memref<32x48xbf16, #tpu.memory_space<vmem>>, %arg3: memref<32x1xf32, #tpu.memory_space<vmem>>, %arg4: memref<64x32xbf16, #tpu.memory_space<vmem>>, %arg5: memref<64x1xf32, #tpu.memory_space<vmem>>, %arg6: memref<2x64x256xf32, #tpu.memory_space<vmem>>) attributes {dimension_semantics = [#tpu.dimension_semantics<parallel>], iteration_bounds = array<i64: 1>, scalar_prefetch = 0 : i64, scratch_operands = 0 : i64, tpu.core_type = #tpu.core_type<tc>, window_params = [{transform_indices = @transform_0, window_bounds = array<i64: 48, 512>}, {pipeline_mode = #tpu.pipeline_mode<synchronous>, transform_indices = @transform_1, window_bounds = array<i64: 32, 48>}, {pipeline_mode = #tpu.pipeline_mode<synchronous>, transform_indices = @transform_2, window_bounds = array<i64: 32, 1>}, {pipeline_mode = #tpu.pipeline_mode<synchronous>, transform_indices = @transform_3, window_bounds = array<i64: 64, 32>}, {pipeline_mode = #tpu.pipeline_mode<synchronous>, transform_indices = @transform_4, window_bounds = array<i64: 64, 1>}, {transform_indices = @transform_5, window_bounds = array<i64: 2, 64, 256>}]} {
    %c0 = arith.constant 0 : index
    %c0_0 = arith.constant 0 : index
    %0 = vector.load %arg2[%c0, %c0_0] : memref<32x48xbf16, #tpu.memory_space<vmem>>, vector<32x48xbf16>
    %c0_1 = arith.constant 0 : index
    %c0_2 = arith.constant 0 : index
    %1 = vector.load %arg1[%c0_1, %c0_2] : memref<48x512xbf16, #tpu.memory_space<vmem>>, vector<48x512xbf16>
    %cst = arith.constant dense<0.000000e+00> : vector<32x512xf32>
    %2 = tpu.matmul %0, %1, %cst {dimension_numbers = #tpu.dot_dimension_numbers<[1], [0], [0], [1], [0, 0, 1, 1], [], []>} : vector<32x48xbf16>, vector<48x512xbf16>, vector<32x512xf32> -> vector<32x512xf32>
    %c0_3 = arith.constant 0 : index
    %c0_4 = arith.constant 0 : index
    %3 = vector.load %arg3[%c0_3, %c0_4] : memref<32x1xf32, #tpu.memory_space<vmem>>, vector<32x1xf32>
    %4 = vector.broadcast %3 : vector<32x1xf32> to vector<32x512xf32>
    %5 = arith.addf %2, %4 : vector<32x512xf32>
    %cst_5 = arith.constant 0.000000e+00 : f32
    %6 = vector.broadcast %cst_5 : f32 to vector<32x512xf32>
    %7 = arith.maximumf %5, %6 : vector<32x512xf32>
    %c0_6 = arith.constant 0 : index
    %c0_7 = arith.constant 0 : index
    %8 = vector.load %arg4[%c0_6, %c0_7] : memref<64x32xbf16, #tpu.memory_space<vmem>>, vector<64x32xbf16>
    %9 = arith.truncf %7 : vector<32x512xf32> to vector<32x512xbf16>
    %cst_8 = arith.constant dense<0.000000e+00> : vector<64x512xf32>
    %10 = tpu.matmul %8, %9, %cst_8 {dimension_numbers = #tpu.dot_dimension_numbers<[1], [0], [0], [1], [0, 0, 1, 1], [], []>} : vector<64x32xbf16>, vector<32x512xbf16>, vector<64x512xf32> -> vector<64x512xf32>
    %c0_9 = arith.constant 0 : index
    %c0_10 = arith.constant 0 : index
    %11 = vector.load %arg5[%c0_9, %c0_10] : memref<64x1xf32, #tpu.memory_space<vmem>>, vector<64x1xf32>
    %12 = vector.broadcast %11 : vector<64x1xf32> to vector<64x512xf32>
    %13 = arith.addf %10, %12 : vector<64x512xf32>
    %14 = vector.extract_strided_slice %13 {offsets = [0, 0], sizes = [64, 256], strides = [1, 1]} : vector<64x512xf32> to vector<64x256xf32>
    %c0_11 = arith.constant 0 : index
    %c0_12 = arith.constant 0 : index
    %c0_13 = arith.constant 0 : index
    %15 = vector.load %arg6[%c0_11, %c0_12, %c0_13] : memref<2x64x256xf32, #tpu.memory_space<vmem>>, vector<1x64x256xf32>
    %16 = vector.shape_cast %15 : vector<1x64x256xf32> to vector<64x256xf32>
    %17 = vector.shape_cast %14 : vector<64x256xf32> to vector<1x64x256xf32>
    tpu.vector_store %arg6[%c0_11, %c0_12, %c0_13], %17 {strides = array<i32>} : memref<2x64x256xf32, #tpu.memory_space<vmem>>, vector<1x64x256xf32>,
    %18 = vector.extract_strided_slice %13 {offsets = [0, 256], sizes = [64, 256], strides = [1, 1]} : vector<64x512xf32> to vector<64x256xf32>
    %c1 = arith.constant 1 : index
    %c0_14 = arith.constant 0 : index
    %c0_15 = arith.constant 0 : index
    %19 = vector.load %arg6[%c1, %c0_14, %c0_15] : memref<2x64x256xf32, #tpu.memory_space<vmem>>, vector<1x64x256xf32>
    %20 = vector.shape_cast %19 : vector<1x64x256xf32> to vector<64x256xf32>
    %21 = vector.shape_cast %18 : vector<64x256xf32> to vector<1x64x256xf32>
    tpu.vector_store %arg6[%c1, %c0_14, %c0_15], %21 {strides = array<i32>} : memref<2x64x256xf32, #tpu.memory_space<vmem>>, vector<1x64x256xf32>,
    return
  }
  func.func @transform_0(%arg0: i32) -> (i32, i32) {
    %c0_i32 = arith.constant 0 : i32
    %c0_i32_0 = arith.constant 0 : i32
    return %c0_i32, %arg0 : i32, i32
  }
  func.func @transform_1(%arg0: i32) -> (i32, i32) {
    %c0_i32 = arith.constant 0 : i32
    %c0_i32_0 = arith.constant 0 : i32
    %c0_i32_1 = arith.constant 0 : i32
    return %c0_i32, %c0_i32_0 : i32, i32
  }
  func.func @transform_2(%arg0: i32) -> (i32, i32) {
    %c0_i32 = arith.constant 0 : i32
    %c0_i32_0 = arith.constant 0 : i32
    %c0_i32_1 = arith.constant 0 : i32
    return %c0_i32, %c0_i32_0 : i32, i32
  }
  func.func @transform_3(%arg0: i32) -> (i32, i32) {
    %c0_i32 = arith.constant 0 : i32
    %c0_i32_0 = arith.constant 0 : i32
    %c0_i32_1 = arith.constant 0 : i32
    return %c0_i32, %c0_i32_0 : i32, i32
  }
  func.func @transform_4(%arg0: i32) -> (i32, i32) {
    %c0_i32 = arith.constant 0 : i32
    %c0_i32_0 = arith.constant 0 : i32
    %c0_i32_1 = arith.constant 0 : i32
    return %c0_i32, %c0_i32_0 : i32, i32
  }
  func.func @transform_5(%arg0: i32) -> (i32, i32, i32) {
    %c0_i32 = arith.constant 0 : i32
    %c0_i32_0 = arith.constant 0 : i32
    %c0_i32_1 = arith.constant 0 : i32
    return %arg0, %c0_i32, %c0_i32_0 : i32, i32, i32
  }
}

</mosaic_0001>

<llo_original>
// kernel: rpn_forward.1
$region0: #{rpn_forward.1}
  #allocation0 [shape = 'u32[]', space=smem, size = 0x4, offset = 0x4, fixed_abs, tag = 'smem constant byte address 0x4 - core index']
  #allocation1 [shape = 'u32[144,128]{1,0:T(1,128)}', space=vmem, size = 0x12000, scoped, tag = 'internal scratch']
  %s0 = inlined_call_operand.vmem [shape: bf16[48,512], index: 0, kind: input, shape index: {}]
  %s1 = inlined_call_operand.vmem [shape: bf16[32,48], index: 1, kind: input, shape index: {}]
  %s2 = inlined_call_operand.vmem [shape: f32[32,1], index: 2, kind: input, shape index: {}]
  %s3 = inlined_call_operand.vmem [shape: bf16[64,32], index: 3, kind: input, shape index: {}]
  %s4 = inlined_call_operand.vmem [shape: f32[64,1], index: 4, kind: input, shape index: {}]
  %s5 = inlined_call_operand.vmem [shape: f32[2,64,256], index: 5, kind: output, shape index: {}]
  %s6 = sld [smem:[#allocation0]]
  $region30: #{rpn_forward.1} parent=0
    _
  %s8 = ssub.s32 1, %s6
  %s9 = scalar_select 0, %s8, %s6
  // Predicated region
  $region2: #{rpn_forward.1} parent=0 // pred_check
    _
  $region3: #{rpn_forward.1} parent=0 // pred_check_branch
    %11 = sbr.rel (0) target = $region5
  $region4: #{rpn_forward.1} parent=0 // pred_region
    _
  $region5: #{rpn_forward.1} parent=0 // pred_fallthru
    _
  // Predicated region
  $region6: #{rpn_forward.1} parent=0 // pred_check
    _
  $region7: #{rpn_forward.1} parent=0 // pred_check_branch
    %13 = sbr.rel (0) target = $region9
  $region8: #{rpn_forward.1} parent=0 // pred_region
    _
  $region9: #{rpn_forward.1} parent=0 // pred_fallthru
    _
  // Predicated region
  $region10: #{rpn_forward.1} parent=0 // pred_check
    _
  $region11: #{rpn_forward.1} parent=0 // pred_check_branch
    %15 = sbr.rel (0) target = $region13
  $region12: #{rpn_forward.1} parent=0 // pred_region
    _
  $region13: #{rpn_forward.1} parent=0 // pred_fallthru
    _
  // Predicated region
  $region14: #{rpn_forward.1} parent=0 // pred_check
    _
  $region15: #{rpn_forward.1} parent=0 // pred_check_branch
    %17 = sbr.rel (0) target = $region17
  $region16: #{rpn_forward.1} parent=0 // pred_region
    _
  $region17: #{rpn_forward.1} parent=0 // pred_fallthru
    _
  // Predicated region
  $region18: #{rpn_forward.1} parent=0 // pred_check
    _
  $region19: #{rpn_forward.1} parent=0 // pred_check_branch
    %19 = sbr.rel (0) target = $region21
  $region20: #{rpn_forward.1} parent=0 // pred_region
    _
  $region21: #{rpn_forward.1} parent=0 // pred_fallthru
    _
  %v21 = vld [vmem:[%s1] sm:$0xf]
  %v22 = vld [vmem:[%s1 + $0x4] sm:$0xf]
  %v23 = vld [vmem:[%s1 + $0x8] sm:$0xf]
  %v24 = vld [vmem:[%s1 + $0xc] sm:$0xf]
  %v25 = vld [vmem:[%s0] sm:$0xff]
  %v26 = vld [vmem:[%s0 + $0x8] sm:$0xff]
  %v27 = vld [vmem:[%s0 + $0x10] sm:$0xff]
  %v28 = vld [vmem:[%s0 + $0x18] sm:$0xff]
  %v29 = vld [vmem:[%s0 + $0x20] sm:$0xff]
  %v30 = vld [vmem:[%s0 + $0x28] sm:$0xff]
  %v31 = vld [vmem:[%s0 + $0x30] sm:$0xff]
  %v32 = vld [vmem:[%s0 + $0x38] sm:$0xff]
  %v33 = vld [vmem:[%s0 + $0x40] sm:$0xff]
  %v34 = vld [vmem:[%s0 + $0x48] sm:$0xff]
  %v35 = vld [vmem:[%s0 + $0x50] sm:$0xff]
  %v36 = vld [vmem:[%s0 + $0x58] sm:$0xff]
  %v37 = vld [vmem:[%s2] sm:$0xff]
  %v38 = vld [vmem:[%s2 + $0x8] sm:$0xff]
  %v39 = vld [vmem:[%s2 + $0x10] sm:$0xff]
  %v40 = vld [vmem:[%s2 + $0x18] sm:$0xff]
  %42 = vset.pattern.permute.xlu0 0
  %43 = vperm.xlu0 %42, %v37
  %v44 = vpop.permute.xlu0 %43
  %47 = vset.pattern.permute.xlu0 0
  %48 = vperm.xlu0 %47, %v38
  %v49 = vpop.permute.xlu0 %48
  %52 = vset.pattern.permute.xlu0 0
  %53 = vperm.xlu0 %52, %v39
  %v54 = vpop.permute.xlu0 %53
  %57 = vset.pattern.permute.xlu0 0
  %58 = vperm.xlu0 %57, %v40
  %v59 = vpop.permute.xlu0 %58
  %v65 = vunpack.c.l.b16 %v21
  %v66 = vunpack.c.l.b16 %v22
  %v67 = vunpack.c.l.b16 %v23
  %v68 = vunpack.c.l.b16 %v24
  %v69 = vpack.c.b16 %v66, %v65
  %v70 = vpack.c.b16 %v68, %v67
  %v83 = vunpack.c.l.b16 %v25
  %v84 = vunpack.c.h.b16 %v25
  %v85 = vunpack.c.l.b16 %v26
  %v86 = vunpack.c.h.b16 %v26
  %v87 = vunpack.c.l.b16 %v27
  %v88 = vunpack.c.h.b16 %v27
  %v89 = vunpack.c.l.b16 %v28
  %v90 = vunpack.c.h.b16 %v28
  %v91 = vunpack.c.l.b16 %v29
  %v92 = vunpack.c.h.b16 %v29
  %v93 = vunpack.c.l.b16 %v30
  %v94 = vunpack.c.h.b16 %v30
  %v95 = vunpack.c.l.b16 %v31
  %v96 = vunpack.c.h.b16 %v31
  %v97 = vunpack.c.l.b16 %v32
  %v98 = vunpack.c.h.b16 %v32
  %v99 = vunpack.c.l.b16 %v33
  %v100 = vunpack.c.h.b16 %v33
  %v101 = vunpack.c.l.b16 %v34
  %v102 = vunpack.c.h.b16 %v34
  %v103 = vunpack.c.l.b16 %v35
  %v104 = vunpack.c.h.b16 %v35
  %v105 = vunpack.c.l.b16 %v36
  %v106 = vunpack.c.h.b16 %v36
  %v107 = vpack.c.b16 %v87, %v83
  %v108 = vpack.c.b16 %v88, %v84
  %v109 = vpack.c.b16 %v89, %v85
  %v110 = vpack.c.b16 %v90, %v86
  %v111 = vpack.c.b16 %v95, %v91
  %v112 = vpack.c.b16 %v96, %v92
  %v113 = vpack.c.b16 %v97, %v93
  %v114 = vpack.c.b16 %v98, %v94
  %v115 = vpack.c.b16 %v103, %v99
  %v116 = vpack.c.b16 %v104, %v100
  %v117 = vpack.c.b16 %v105, %v101
  %v118 = vpack.c.b16 %v106, %v102
  %vm131 = vcmask 392192
  %v133 = vsel %vm131, %v69, 0
  %v136 = vsel %vm131, %v70, 0
  %138 = vmatprep.subr.bf16.mxu0 0
  %139 = vmatpush1.bf16.msra.mxu0 0
  %140 = vmatprep.subr.bf16.mxu0 0
  %141 = vmatpush1.bf16.msra.mxu0 0
  %142 = vmatprep.subr.bf16.mxu0 0
  %143 = vmatpush1.bf16.msra.mxu0 0
  %144 = vmatprep.subr.bf16.mxu0 0
  %145 = vmatpush1.bf16.msra.mxu0 0
  %146 = vmatprep.subr.bf16.mxu0 0
  %147 = vmatpush1.bf16.msra.mxu0 0
  %148 = vmatprep.subr.bf16.mxu0 %v116
  %149 = vmatpush1.bf16.msra.mxu0 %v115
  %150 = vmatprep.subr.bf16.mxu0 %v112
  %151 = vmatpush1.bf16.msra.mxu0 %v111
  %152 = vmatprep.subr.bf16.mxu0 %v108
  %153 = vmatpush1.bf16.msra.mxu0 %v107
  %154 = vmatprep.subr.bf16.mxu0 0
  %155 = vmatpush2.bf16.msra.mxu0 0
  %156 = vmatprep.subr.bf16.mxu0 0
  %157 = vmatpush2.bf16.msra.mxu0 0
  %158 = vmatprep.subr.bf16.mxu0 0
  %159 = vmatpush2.bf16.msra.mxu0 0
  %160 = vmatprep.subr.bf16.mxu0 0
  %161 = vmatpush2.bf16.msra.mxu0 0
  %162 = vmatprep.subr.bf16.mxu0 0
  %163 = vmatpush2.bf16.msra.mxu0 0
  %164 = vmatprep.subr.bf16.mxu0 0
  %165 = vmatpush2.bf16.msra.mxu0 0
  %166 = vmatprep.subr.bf16.mxu0 0
  %167 = vmatpush2.bf16.msra.mxu0 0
  %168 = vmatprep.subr.bf16.mxu0 0
  %169 = vmatpush2.bf16.msra.mxu0 0
  %170 = vmatprep.mubr.bf16.mxu0 0
  %171 = vmatmul.mubr.bf16.gmra.mxu0 %v133
  %v172 = vpop.f32.mrf.mxu0
  %v173 = vadd.f32 %v44, %v172
  %v174 = vpop.f32.mrf.mxu0
  %v175 = vadd.f32 %v44, %v174
  %v176 = vpop.f32.mrf.mxu0
  %v177 = vadd.f32 %v49, %v176
  %v178 = vpop.f32.mrf.mxu0
  %v179 = vadd.f32 %v49, %v178
  %180 = vmatprep.mubr.bf16.mxu0 0
  %181 = vmatmul.mubr.bf16.gmra.mxu0 %v136
  %v182 = vpop.f32.mrf.mxu0
  %v183 = vadd.f32 %v54, %v182
  %v184 = vpop.f32.mrf.mxu0
  %v185 = vadd.f32 %v54, %v184
  %v186 = vpop.f32.mrf.mxu0
  %v187 = vadd.f32 %v59, %v186
  %v188 = vpop.f32.mrf.mxu0
  %v189 = vadd.f32 %v59, %v188
  %190 = vdwg.mxu0
  %191 = vmatprep.subr.bf16.mxu0 0
  %192 = vmatpush1.bf16.msra.mxu0 0
  %193 = vmatprep.subr.bf16.mxu0 0
  %194 = vmatpush1.bf16.msra.mxu0 0
  %195 = vmatprep.subr.bf16.mxu0 0
  %196 = vmatpush1.bf16.msra.mxu0 0
  %197 = vmatprep.subr.bf16.mxu0 0
  %198 = vmatpush1.bf16.msra.mxu0 0
  %199 = vmatprep.subr.bf16.mxu0 0
  %200 = vmatpush1.bf16.msra.mxu0 0
  %201 = vmatprep.subr.bf16.mxu0 %v118
  %202 = vmatpush1.bf16.msra.mxu0 %v117
  %203 = vmatprep.subr.bf16.mxu0 %v114
  %204 = vmatpush1.bf16.msra.mxu0 %v113
  %205 = vmatprep.subr.bf16.mxu0 %v110
  %206 = vmatpush1.bf16.msra.mxu0 %v109
  %207 = vmatprep.subr.bf16.mxu0 0
  %208 = vmatpush2.bf16.msra.mxu0 0
  %209 = vmatprep.subr.bf16.mxu0 0
  %210 = vmatpush2.bf16.msra.mxu0 0
  %211 = vmatprep.subr.bf16.mxu0 0
  %212 = vmatpush2.bf16.msra.mxu0 0
  %213 = vmatprep.subr.bf16.mxu0 0
  %214 = vmatpush2.bf16.msra.mxu0 0
  %215 = vmatprep.subr.bf16.mxu0 0
  %216 = vmatpush2.bf16.msra.mxu0 0
  %217 = vmatprep.subr.bf16.mxu0 0
  %218 = vmatpush2.bf16.msra.mxu0 0
  %219 = vmatprep.subr.bf16.mxu0 0
  %220 = vmatpush2.bf16.msra.mxu0 0
  %221 = vmatprep.subr.bf16.mxu0 0
  %222 = vmatpush2.bf16.msra.mxu0 0
  %223 = vmatprep.mubr.bf16.mxu0 0
  %224 = vmatmul.mubr.bf16.gmra.mxu0 %v133
  %v225 = vpop.f32.mrf.mxu0
  %v226 = vadd.f32 %v44, %v225
  %v227 = vpop.f32.mrf.mxu0
  %v228 = vadd.f32 %v44, %v227
  %v229 = vpop.f32.mrf.mxu0
  %v230 = vadd.f32 %v49, %v229
  %v231 = vpop.f32.mrf.mxu0
  %v232 = vadd.f32 %v49, %v231
  %233 = vmatprep.mubr.bf16.mxu0 0
  %234 = vmatmul.mubr.bf16.gmra.mxu0 %v136
  %v235 = vpop.f32.mrf.mxu0
  %v236 = vadd.f32 %v54, %v235
  %v237 = vpop.f32.mrf.mxu0
  %v238 = vadd.f32 %v54, %v237
  %v239 = vpop.f32.mrf.mxu0
  %v240 = vadd.f32 %v59, %v239
  %v241 = vpop.f32.mrf.mxu0
  %v242 = vadd.f32 %v59, %v241
  %243 = vdwg.mxu0
  %v244 = vmax.f32 %v173, 0.0
  %v245 = vmax.f32 %v175, 0.0
  %v246 = vmax.f32 %v226, 0.0
  %v247 = vmax.f32 %v228, 0.0
  %v248 = vmax.f32 %v177, 0.0
  %v249 = vmax.f32 %v179, 0.0
  %v250 = vmax.f32 %v230, 0.0
  %v251 = vmax.f32 %v232, 0.0
  %v252 = vmax.f32 %v183, 0.0
  %v253 = vmax.f32 %v185, 0.0
  %v254 = vmax.f32 %v236, 0.0
  %v255 = vmax.f32 %v238, 0.0
  %v256 = vmax.f32 %v187, 0.0
  %v257 = vmax.f32 %v189, 0.0
  %v258 = vmax.f32 %v240, 0.0
  %v259 = vmax.f32 %v242, 0.0
  %v260 = vld [vmem:[%s3] sm:$0xf]
  %v261 = vld [vmem:[%s3 + $0x4] sm:$0xf]
  %v262 = vld [vmem:[%s3 + $0x8] sm:$0xf]
  %v263 = vld [vmem:[%s3 + $0xc] sm:$0xf]
  %v264 = vld [vmem:[%s3 + $0x10] sm:$0xf]
  %v265 = vld [vmem:[%s3 + $0x14] sm:$0xf]
  %v266 = vld [vmem:[%s3 + $0x18] sm:$0xf]
  %v267 = vld [vmem:[%s3 + $0x1c] sm:$0xf]
  %v268 = vpack.c.bf16 %v248, %v244
  %v269 = vpack.c.bf16 %v249, %v245
  %v270 = vpack.c.bf16 %v250, %v246
  %v271 = vpack.c.bf16 %v251, %v247
  %v272 = vpack.c.bf16 %v256, %v252
  %v273 = vpack.c.bf16 %v257, %v253
  %v274 = vpack.c.bf16 %v258, %v254
  %v275 = vpack.c.bf16 %v259, %v255
  %v276 = vld [vmem:[%s4] sm:$0xff]
  %v277 = vld [vmem:[%s4 + $0x8] sm:$0xff]
  %v278 = vld [vmem:[%s4 + $0x10] sm:$0xff]
  %v279 = vld [vmem:[%s4 + $0x18] sm:$0xff]
  %v280 = vld [vmem:[%s4 + $0x20] sm:$0xff]
  %v281 = vld [vmem:[%s4 + $0x28] sm:$0xff]
  %v282 = vld [vmem:[%s4 + $0x30] sm:$0xff]
  %v283 = vld [vmem:[%s4 + $0x38] sm:$0xff]
  %285 = vset.pattern.permute.xlu0 0
  %286 = vperm.xlu0 %285, %v276
  %v287 = vpop.permute.xlu0 %286
  %290 = vset.pattern.permute.xlu0 0
  %291 = vperm.xlu0 %290, %v277
  %v292 = vpop.permute.xlu0 %291
  %295 = vset.pattern.permute.xlu0 0
  %296 = vperm.xlu0 %295, %v278
  %v297 = vpop.permute.xlu0 %296
  %300 = vset.pattern.permute.xlu0 0
  %301 = vperm.xlu0 %300, %v279
  %v302 = vpop.permute.xlu0 %301
  %305 = vset.pattern.permute.xlu0 0
  %306 = vperm.xlu0 %305, %v280
  %v307 = vpop.permute.xlu0 %306
  %310 = vset.pattern.permute.xlu0 0
  %311 = vperm.xlu0 %310, %v281
  %v312 = vpop.permute.xlu0 %311
  %315 = vset.pattern.permute.xlu0 0
  %316 = vperm.xlu0 %315, %v282
  %v317 = vpop.permute.xlu0 %316
  %320 = vset.pattern.permute.xlu0 0
  %321 = vperm.xlu0 %320, %v283
  %v322 = vpop.permute.xlu0 %321
  %v332 = vunpack.c.l.b16 %v260
  %v333 = vunpack.c.l.b16 %v261
  %v334 = vunpack.c.l.b16 %v262
  %v335 = vunpack.c.l.b16 %v263
  %v336 = vunpack.c.l.b16 %v264
  %v337 = vunpack.c.l.b16 %v265
  %v338 = vunpack.c.l.b16 %v266
  %v339 = vunpack.c.l.b16 %v267
  %v340 = vpack.c.b16 %v333, %v332
  %v341 = vpack.c.b16 %v335, %v334
  %v342 = vpack.c.b16 %v337, %v336
  %v343 = vpack.c.b16 %v339, %v338
  %vm344 = vcmask 261120
  %v346 = vsel %vm344, %v340, 0
  %v349 = vsel %vm344, %v341, 0
  %v352 = vsel %vm344, %v342, 0
  %v355 = vsel %vm344, %v343, 0
  %357 = vmatprep.subr.bf16.mxu0 0
  %358 = vmatpush1.bf16.msra.mxu0 0
  %359 = vmatprep.subr.bf16.mxu0 0
  %360 = vmatpush1.bf16.msra.mxu0 0
  %361 = vmatprep.subr.bf16.mxu0 0
  %362 = vmatpush1.bf16.msra.mxu0 0
  %363 = vmatprep.subr.bf16.mxu0 0
  %364 = vmatpush1.bf16.msra.mxu0 0
  %365 = vmatprep.subr.bf16.mxu0 0
  %366 = vmatpush1.bf16.msra.mxu0 0
  %367 = vmatprep.subr.bf16.mxu0 0
  %368 = vmatpush1.bf16.msra.mxu0 0
  %369 = vmatprep.subr.bf16.mxu0 %v273
  %370 = vmatpush1.bf16.msra.mxu0 %v272
  %371 = vmatprep.subr.bf16.mxu0 %v269
  %372 = vmatpush1.bf16.msra.mxu0 %v268
  %373 = vmatprep.subr.bf16.mxu0 0
  %374 = vmatpush2.bf16.msra.mxu0 0
  %375 = vmatprep.subr.bf16.mxu0 0
  %376 = vmatpush2.bf16.msra.mxu0 0
  %377 = vmatprep.subr.bf16.mxu0 0
  %378 = vmatpush2.bf16.msra.mxu0 0
  %379 = vmatprep.subr.bf16.mxu0 0
  %380 = vmatpush2.bf16.msra.mxu0 0
  %381 = vmatprep.subr.bf16.mxu0 0
  %382 = vmatpush2.bf16.msra.mxu0 0
  %383 = vmatprep.subr.bf16.mxu0 0
  %384 = vmatpush2.bf16.msra.mxu0 0
  %385 = vmatprep.subr.bf16.mxu0 0
  %386 = vmatpush2.bf16.msra.mxu0 0
  %387 = vmatprep.subr.bf16.mxu0 0
  %388 = vmatpush2.bf16.msra.mxu0 0
  %389 = vmatprep.mubr.bf16.mxu0 0
  %390 = vmatmul.mubr.bf16.gmra.mxu0 %v346
  %v391 = vpop.f32.mrf.mxu0
  %v392 = vadd.f32 %v287, %v391
  %v393 = vpop.f32.mrf.mxu0
  %v394 = vadd.f32 %v287, %v393
  %v395 = vpop.f32.mrf.mxu0
  %v396 = vadd.f32 %v292, %v395
  %v397 = vpop.f32.mrf.mxu0
  %v398 = vadd.f32 %v292, %v397
  %399 = vmatprep.mubr.bf16.mxu0 0
  %400 = vmatmul.mubr.bf16.gmra.mxu0 %v349
  %v401 = vpop.f32.mrf.mxu0
  %v402 = vadd.f32 %v297, %v401
  %v403 = vpop.f32.mrf.mxu0
  %v404 = vadd.f32 %v297, %v403
  %v405 = vpop.f32.mrf.mxu0
  %v406 = vadd.f32 %v302, %v405
  %v407 = vpop.f32.mrf.mxu0
  %v408 = vadd.f32 %v302, %v407
  %409 = vmatprep.mubr.bf16.mxu0 0
  %410 = vmatmul.mubr.bf16.gmra.mxu0 %v352
  %v411 = vpop.f32.mrf.mxu0
  %v412 = vadd.f32 %v307, %v411
  %v413 = vpop.f32.mrf.mxu0
  %v414 = vadd.f32 %v307, %v413
  %v415 = vpop.f32.mrf.mxu0
  %v416 = vadd.f32 %v312, %v415
  %v417 = vpop.f32.mrf.mxu0
  %v418 = vadd.f32 %v312, %v417
  %419 = vmatprep.mubr.bf16.mxu0 0
  %420 = vmatmul.mubr.bf16.gmra.mxu0 %v355
  %v421 = vpop.f32.mrf.mxu0
  %v422 = vadd.f32 %v317, %v421
  %v423 = vpop.f32.mrf.mxu0
  %v424 = vadd.f32 %v317, %v423
  %v425 = vpop.f32.mrf.mxu0
  %v426 = vadd.f32 %v322, %v425
  %v427 = vpop.f32.mrf.mxu0
  %v428 = vadd.f32 %v322, %v427
  %429 = vdwg.mxu0
  %430 = vmatprep.subr.bf16.mxu0 0
  %431 = vmatpush1.bf16.msra.mxu0 0
  %432 = vmatprep.subr.bf16.mxu0 0
  %433 = vmatpush1.bf16.msra.mxu0 0
  %434 = vmatprep.subr.bf16.mxu0 0
  %435 = vmatpush1.bf16.msra.mxu0 0
  %436 = vmatprep.subr.bf16.mxu0 0
  %437 = vmatpush1.bf16.msra.mxu0 0
  %438 = vmatprep.subr.bf16.mxu0 0
  %439 = vmatpush1.bf16.msra.mxu0 0
  %440 = vmatprep.subr.bf16.mxu0 0
  %441 = vmatpush1.bf16.msra.mxu0 0
  %442 = vmatprep.subr.bf16.mxu0 %v275
  %443 = vmatpush1.bf16.msra.mxu0 %v274
  %444 = vmatprep.subr.bf16.mxu0 %v271
  %445 = vmatpush1.bf16.msra.mxu0 %v270
  %446 = vmatprep.subr.bf16.mxu0 0
  %447 = vmatpush2.bf16.msra.mxu0 0
  %448 = vmatprep.subr.bf16.mxu0 0
  %449 = vmatpush2.bf16.msra.mxu0 0
  %450 = vmatprep.subr.bf16.mxu0 0
  %451 = vmatpush2.bf16.msra.mxu0 0
  %452 = vmatprep.subr.bf16.mxu0 0
  %453 = vmatpush2.bf16.msra.mxu0 0
  %454 = vmatprep.subr.bf16.mxu0 0
  %455 = vmatpush2.bf16.msra.mxu0 0
  %456 = vmatprep.subr.bf16.mxu0 0
  %457 = vmatpush2.bf16.msra.mxu0 0
  %458 = vmatprep.subr.bf16.mxu0 0
  %459 = vmatpush2.bf16.msra.mxu0 0
  %460 = vmatprep.subr.bf16.mxu0 0
  %461 = vmatpush2.bf16.msra.mxu0 0
  %462 = vmatprep.mubr.bf16.mxu0 0
  %463 = vmatmul.mubr.bf16.gmra.mxu0 %v346
  %v464 = vpop.f32.mrf.mxu0
  %v465 = vadd.f32 %v287, %v464
  %v466 = vpop.f32.mrf.mxu0
  %v467 = vadd.f32 %v287, %v466
  %v468 = vpop.f32.mrf.mxu0
  %v469 = vadd.f32 %v292, %v468
  %v470 = vpop.f32.mrf.mxu0
  %v471 = vadd.f32 %v292, %v470
  %472 = vmatprep.mubr.bf16.mxu0 0
  %473 = vmatmul.mubr.bf16.gmra.mxu0 %v349
  %v474 = vpop.f32.mrf.mxu0
  %v475 = vadd.f32 %v297, %v474
  %v476 = vpop.f32.mrf.mxu0
  %v477 = vadd.f32 %v297, %v476
  %v478 = vpop.f32.mrf.mxu0
  %v479 = vadd.f32 %v302, %v478
  %v480 = vpop.f32.mrf.mxu0
  %v481 = vadd.f32 %v302, %v480
  %482 = vmatprep.mubr.bf16.mxu0 0
  %483 = vmatmul.mubr.bf16.gmra.mxu0 %v352
  %v484 = vpop.f32.mrf.mxu0
  %v485 = vadd.f32 %v307, %v484
  %v486 = vpop.f32.mrf.mxu0
  %v487 = vadd.f32 %v307, %v486
  %v488 = vpop.f32.mrf.mxu0
  %v489 = vadd.f32 %v312, %v488
  %v490 = vpop.f32.mrf.mxu0
  %v491 = vadd.f32 %v312, %v490
  %492 = vmatprep.mubr.bf16.mxu0 0
  %493 = vmatmul.mubr.bf16.gmra.mxu0 %v355
  %v494 = vpop.f32.mrf.mxu0
  %v495 = vadd.f32 %v317, %v494
  %v496 = vpop.f32.mrf.mxu0
  %v497 = vadd.f32 %v317, %v496
  %v498 = vpop.f32.mrf.mxu0
  %v499 = vadd.f32 %v322, %v498
  %v500 = vpop.f32.mrf.mxu0
  %v501 = vadd.f32 %v322, %v500
  %502 = vdwg.mxu0
  %503 = vst [vmem:[%s5] sm:$0xff] %v392
  %504 = vst [vmem:[%s5 + $0x8] sm:$0xff] %v394
  %505 = vst [vmem:[%s5 + $0x10] sm:$0xff] %v396
  %506 = vst [vmem:[%s5 + $0x18] sm:$0xff] %v398
  %507 = vst [vmem:[%s5 + $0x20] sm:$0xff] %v402
  %508 = vst [vmem:[%s5 + $0x28] sm:$0xff] %v404
  %509 = vst [vmem:[%s5 + $0x30] sm:$0xff] %v406
  %510 = vst [vmem:[%s5 + $0x38] sm:$0xff] %v408
  %511 = vst [vmem:[%s5 + $0x40] sm:$0xff] %v412
  %512 = vst [vmem:[%s5 + $0x48] sm:$0xff] %v414
  %513 = vst [vmem:[%s5 + $0x50] sm:$0xff] %v416
  %514 = vst [vmem:[%s5 + $0x58] sm:$0xff] %v418
  %515 = vst [vmem:[%s5 + $0x60] sm:$0xff] %v422
  %516 = vst [vmem:[%s5 + $0x68] sm:$0xff] %v424
  %517 = vst [vmem:[%s5 + $0x70] sm:$0xff] %v426
  %518 = vst [vmem:[%s5 + $0x78] sm:$0xff] %v428
  %s519 = scalar_lea.vmem %s5, 128
  %520 = vst [vmem:[%s519] sm:$0xff] %v465
  %521 = vst [vmem:[%s519 + $0x8] sm:$0xff] %v467
  %522 = vst [vmem:[%s519 + $0x10] sm:$0xff] %v469
  %523 = vst [vmem:[%s519 + $0x18] sm:$0xff] %v471
  %524 = vst [vmem:[%s519 + $0x20] sm:$0xff] %v475
  %525 = vst [vmem:[%s519 + $0x28] sm:$0xff] %v477
  %526 = vst [vmem:[%s519 + $0x30] sm:$0xff] %v479
  %527 = vst [vmem:[%s519 + $0x38] sm:$0xff] %v481
  %528 = vst [vmem:[%s519 + $0x40] sm:$0xff] %v485
  %529 = vst [vmem:[%s519 + $0x48] sm:$0xff] %v487
  %530 = vst [vmem:[%s519 + $0x50] sm:$0xff] %v489
  %531 = vst [vmem:[%s519 + $0x58] sm:$0xff] %v491
  %532 = vst [vmem:[%s519 + $0x60] sm:$0xff] %v495
  %533 = vst [vmem:[%s519 + $0x68] sm:$0xff] %v497
  %534 = vst [vmem:[%s519 + $0x70] sm:$0xff] %v499
  %535 = vst [vmem:[%s519 + $0x78] sm:$0xff] %v501
  // Predicated region
  $region22: #{rpn_forward.1} parent=0 // pred_check
    _
  $region23: #{rpn_forward.1} parent=0 // pred_check_branch
    %537 = sbr.rel (0) target = $region25
  $region24: #{rpn_forward.1} parent=0 // pred_region
    _
  $region25: #{rpn_forward.1} parent=0 // pred_fallthru
    _
  // Predicated region
  $region26: #{rpn_forward.1} parent=0 // pred_check
    _
  $region27: #{rpn_forward.1} parent=0 // pred_check_branch
    %539 = sbr.rel (0) target = $region29
  $region28: #{rpn_forward.1} parent=0 // pred_region
    _
  $region29: #{rpn_forward.1} parent=0 // pred_fallthru
    _

</llo_original>
